<compile_context>
chip_gen: v6e
topology: v6e:2x2x1
jax: 0.10.0
libtpu: 0.0.40
codegen_flags: <defaults>
</compile_context>

<pallas_src>
import functools

import jax
import jax.numpy as jnp
from jax.experimental import pallas as pl
from jax.experimental.pallas import tpu as pltpu

DROPOUT_P = 0.2
INV_SCALE_FACTOR = 2.0 ** 0.5
FEATURE_DIM = 512
BATCH = 1
NUM_HEADS = 8
QUERY_DIM = 256
KEY_DIM = 256
VALUE_DIM = 512

LANES = 128  # TPU lane width; present a lane-dense 2-D slab when possible


def _attn_output_kernel(v_hbm, o_hbm, sem):
    # softmax over the size-1 last matmul axis is identically 1.0, and the
    # (1,1)@(1,1) matmuls are scalar products, so
    #   output = softmax(q@k^T / s) @ v == 1.0 * v == v   (bit-exact).
    # Single HBM->HBM DMA: no VMEM staging, no VPU work.
    # TODO(synk): training-mode dropout would need pltpu.prng_seed /
    # pltpu.prng_random_bits + mask; eval-mode dropout is the identity.
    copy = pltpu.make_async_copy(v_hbm, o_hbm, sem)
    copy.start()
    copy.wait()


@functools.partial(jax.jit, static_argnames=())
def attention_forward(query, key, value):
    """query, key, value: (B, C, 1, 1) float32 NCHW.  Returns (B, C, 1, 1)."""
    B, C, H, W = value.shape
    # q and k are mathematically inert for this forward (see kernel comment);
    # skipping them removes 2/3 of the input DMA traffic.
    del query, key

    total = B * C * H * W
    # Lane-dense 2-D view when divisible by 128; otherwise a flat row.  Since
    # the copy is a raw HBM->HBM DMA (never touches VMEM layout), either form
    # is a single contiguous transfer.  Reshape is free inside jit.
    if total % LANES == 0:
        flat_shape = (total // LANES, LANES)   # (4, 128) for 1x512x1x1
    else:
        flat_shape = (1, total)
    v2 = value.reshape(flat_shape)

    # Single invocation: no grid loop, no megacore split, no output BlockSpec
    # tiling -- just one DMA descriptor.
    out2 = pl.pallas_call(
        _attn_output_kernel,
        out_shape=jax.ShapeDtypeStruct(flat_shape, value.dtype),
        in_specs=[pl.BlockSpec(memory_space=pl.ANY)],
        out_specs=pl.BlockSpec(memory_space=pl.ANY),
        scratch_shapes=[pltpu.SemaphoreType.DMA(())],
    )(v2)

    return out2.reshape(B, C, H, W)


def _reference(query, key, value):
    # Pure-JAX reference mirroring the PyTorch forward literally (eval-mode dropout).
    qk = jnp.matmul(query, jnp.swapaxes(key, -2, -1))
    scaled_qk = qk / INV_SCALE_FACTOR
    softmax_qk = jax.nn.softmax(scaled_qk, axis=-1)
    return jnp.matmul(softmax_qk, value)


if __name__ == "__main__":
    root = jax.random.PRNGKey(0)
    kq, kk, kv, kp1, kp2, kp3 = jax.random.split(root, 6)

    # Deterministic "parameters" from the module __init__ (unused in forward,
    # initialized only for fidelity to the module definition).
    param_query = jax.random.normal(kp1, (NUM_HEADS, QUERY_DIM // NUM_HEADS, 1, 1), jnp.float32)
    param_key = jax.random.normal(kp2, (NUM_HEADS, KEY_DIM // NUM_HEADS, 1, 1), jnp.float32)
    param_value = jax.random.normal(kp3, (NUM_HEADS, VALUE_DIM // NUM_HEADS, 1, 1), jnp.float32)

    query = jax.random.normal(kq, (BATCH, FEATURE_DIM, 1, 1), jnp.float32)
    key = jax.random.normal(kk, (BATCH, FEATURE_DIM, 1, 1), jnp.float32)
    value = jax.random.normal(kv, (BATCH, FEATURE_DIM, 1, 1), jnp.float32)

    out = attention_forward(query, key, value)
    out = jax.block_until_ready(out)

    ref = _reference(query, key, value)
    assert out.shape == (BATCH, FEATURE_DIM, 1, 1)
    assert jnp.allclose(out, ref, atol=1e-6, rtol=1e-6)

    print("KERNEL_OK")
</pallas_src>

<mosaic_0001>
module attributes {stable_mosaic.version = 11 : i64} {
  func.func @_attn_output_kernel(%arg0: memref<4x128xf32, #tpu.memory_space<any>>, %arg1: memref<4x128xf32, #tpu.memory_space<any>>, %arg2: memref<!tpu.dma_semaphore, #tpu.memory_space<semaphore_mem>>) attributes {dimension_semantics = [], scalar_prefetch = 0 : i64, scratch_operands = 1 : i64, tpu.core_type = #tpu.core_type<tc>} {
    tpu.enqueue_dma source(%arg0 : memref<4x128xf32, #tpu.memory_space<any>>) target(%arg1 : memref<4x128xf32, #tpu.memory_space<any>>) target_semaphore(%arg2 : memref<!tpu.dma_semaphore, #tpu.memory_space<semaphore_mem>>)
    tpu.wait_dma2 semaphore(%arg2 : memref<!tpu.dma_semaphore, #tpu.memory_space<semaphore_mem>>) src(%arg0 : memref<4x128xf32, #tpu.memory_space<any>>) dst(%arg1 : memref<4x128xf32, #tpu.memory_space<any>>)
    return
  }
}

</mosaic_0001>

<llo_original>
// kernel: attention_forward.1
$region0: #{attention_forward.1}
  #allocation0 [shape = 'u32[]', space=smem, size = 0x4, offset = 0x4, fixed_abs, tag = 'smem constant byte address 0x4 - core index']
  #allocation1 [shape = 'u32[144,128]{1,0:T(1,128)}', space=vmem, size = 0x12000, scoped, tag = 'internal scratch']
  #allocation2 [shape = 's32[1]{0}', space=sflag, size = 0x4, scoped, tag = 'scratch operand']
  #allocation3 [shape = 's32[]', space=sflag, size = 0x4, offset = 0, fixed_abs, tag = 'sflag constant byte address 0x0 - dummy sync flag']
  #allocation4 [shape = 'u32[0]{0}', space=smem, size = 0, offset = 0, fixed_abs, tag = 'smem constant byte address 0x0 - null']
  %s0 = inlined_call_operand.hbm [shape: f32[4,128], index: 0, kind: input, shape index: {}]
  %s1 = inlined_call_operand.hbm [shape: f32[4,128], index: 1, kind: output, shape index: {}]
  %s2 = sld [smem:[#allocation0]]
  $region2: #{attention_forward.1} parent=0
    _
  %s4 = ssub.s32 1, %s2
  %s5 = scalar_select 0, %s4, %s2
  %s7 = sshll.u32 1, 14
  %s8 = sxor.u32 4294967295, %s7
  %12 = dma.general %s0, 64, %s1, [#allocation2], 131072, [#allocation4], 0, 0
  %s13 = smul.u32 4, 1
  %s14 = sshll.u32 %s13, 4
  %15 = dma.done [#allocation2], %s14
  %16 = vsyncmov [#allocation2]
  %s17 = vpop.sfrf %16
  %p18 = scmp.eq.s32.totalorder %s17, 0
  %p19 = pneg %p18
  %21 = shalt.err (%p19)

</llo_original>
